<compile_context>
chip_gen: v5e
topology: v5e:2x2
jax: 0.10.0
libtpu: 0.0.40
codegen_flags: <defaults>
</compile_context>

<pallas_src>
import math

import jax
import jax.numpy as jnp
from jax import lax
from jax.experimental import pallas as pl
from jax.experimental.pallas import tpu as pltpu


_LANE = 128   # TPU lane width
_PAD = 128    # lane padding on each side of the tap scratch (keeps stores aligned)


def _make_dense_layer_kernel(H, W, G, Mb, pad, chunk):
    """Builds the fused kernel body (closure over static shape integers)."""
    # tap k = (i, j) of the 3x3 kernel reads pixel (h+i-1, w+j-1),
    # i.e. flattened pixel-lane offset (i-1)*W + (j-1).
    shifts = [(i - 1) * W + (j - 1) for i in range(3) for j in range(3)]

    def kernel(x_ref, s1_ref, b1_ref, w1_ref, b2_ref, w2_ref, mask_ref,
               o_ref, tap_ref):
        # x_ref    : (Cin, Mb)          input pixels (lanes = pixels)
        # s1/b1    : (Cin, 1)           folded BN1 scale / bias            (f32)
        # w1_ref   : (Cmid, Cin)        1x1 conv weights with BN2 scale folded in
        # b2_ref   : (Cmid, 1)          folded BN2 bias                    (f32)
        # w2_ref   : (9*G, Cmid)        3x3 conv weights, taps stacked on rows
        # mask_ref : (9, Mb)            per-tap spatial validity mask      (f32)
        # o_ref    : (G, Mb)            output pixels (lane-dense store)
        # tap_ref  : (9*G, Mb + 2*pad)  VMEM scratch for shifted tap reads (f32)

        # --- BN1 + ReLU (elementwise in f32; cast to MXU dtype only for dots) --
        x = x_ref[...].astype(jnp.float32)
        y = jnp.maximum(x * s1_ref[...] + b1_ref[...], 0.0)

        # --- 1x1 conv (+ folded BN2 scale) + BN2 bias + ReLU -------------------
        z = jnp.dot(w1_ref[...], y.astype(w1_ref.dtype),
                    preferred_element_type=jnp.float32)          # (Cmid, Mb)
        z = jnp.maximum(z + b2_ref[...], 0.0)

        # --- 3x3 conv: ONE wide matmul producing all 9 taps at once -----------
        taps = jnp.dot(w2_ref[...], z.astype(w2_ref.dtype),
                       preferred_element_type=jnp.float32)       # (9G, Mb)

        # Park taps in a lane-padded scratch so each tap is read back at its
        # spatial shift with a plain VMEM slice load.  Only the two narrow
        # borders are re-zeroed (the interior is fully overwritten every step;
        # the borders are only ever read under a 0 mask -- zeroing just keeps
        # them finite so 0*garbage can never produce NaN).
        tap_ref[:, 0:pad] = jnp.zeros((9 * G, pad), jnp.float32)
        tap_ref[:, pad + Mb:pad + Mb + pad] = jnp.zeros((9 * G, pad), jnp.float32)
        tap_ref[:, pad:pad + Mb] = taps

        # --- combine the 9 shifted taps (VPU fma), in lane chunks so the f32
        #     accumulator stays small even for large H*W -----------------------
        for c0 in range(0, Mb, chunk):
            acc = jnp.zeros((G, chunk), jnp.float32)
            for k, s in enumerate(shifts):
                t = tap_ref[k * G:(k + 1) * G,
                            pad + s + c0:pad + s + c0 + chunk]    # (G, chunk)
                m = mask_ref[k:k + 1, c0:c0 + chunk]              # (1, chunk)
                acc = acc + m * t
            o_ref[:, c0:c0 + chunk] = acc.astype(o_ref.dtype)

    return kernel


def _pick_batch_block(n, hw, target_lanes=256):
    """Smallest divisor of n whose pixel-lane count is 128-aligned and >= target."""
    for d in range(1, n + 1):
        if n % d == 0 and (d * hw) % _LANE == 0 and d * hw >= target_lanes:
            return d
    return n  # fall back to the whole batch (block == full array dim, always legal)


def dense_layer_forward(prev_features_nchw, params, *,
                        compute_dtype=jnp.bfloat16, eps=1e-5):
    """prev_features_nchw: list of (N, Ci, H, W) arrays. Returns (N, G, H, W)."""
    # ---- glue: concat + CHW-flat layout + BN folding (plain JAX / XLA) -------
    x_nchw = jnp.concatenate(prev_features_nchw, axis=1)        # (N, Cin, H, W)
    N, Cin, H, W = x_nchw.shape
    hw = H * W

    g1, be1, m1, v1 = params["bn1"]
    g2, be2, m2, v2 = params["bn2"]
    w1_oihw = params["conv1_w"]                                 # (Cmid, Cin, 1, 1)
    w2_oihw = params["conv2_w"]                                 # (G, Cmid, 3, 3)
    Cmid, G = w1_oihw.shape[0], w2_oihw.shape[0]

    s1 = g1 / jnp.sqrt(v1 + eps)
    b1 = be1 - m1 * s1
    s2 = g2 / jnp.sqrt(v2 + eps)
    b2 = be2 - m2 * s2

    # BN2 scale folded into the 1x1 conv weights (free, wrapper-side).
    w1p = (w1_oihw[:, :, 0, 0] * s2[:, None]).astype(compute_dtype)   # (Cmid, Cin)
    # 3x3 weights with the 9 taps stacked along rows: row (i*3 + j)*G + g.
    w2s = jnp.transpose(w2_oihw, (2, 3, 0, 1)).reshape(9 * G, Cmid)
    w2s = w2s.astype(compute_dtype)

    # channels -> sublanes, pixels -> lanes
    x2d = jnp.transpose(x_nchw, (1, 0, 2, 3)).reshape(Cin, N * hw)
    x2d = x2d.astype(compute_dtype)

    Nb = _pick_batch_block(N, hw)
    Mb = Nb * hw
    assert N % Nb == 0
    assert (Mb % _LANE == 0) or (Nb == N)
    assert _PAD >= W + 1, "lane padding must cover the largest tap shift"
    chunk = Mb
    for c in (512, 384, 256, 128):
        if Mb % c == 0:
            chunk = c
            break

    # Per-tap spatial validity masks (identical for every grid block, since the
    # h/w pattern repeats every image and blocks are whole images).
    m_idx = jnp.arange(Mb, dtype=jnp.int32)
    h_idx = (m_idx % hw) // W
    w_idx = m_idx % W
    masks = []
    for i in range(3):
        for j in range(3):
            ok_h = (h_idx + i - 1 >= 0) & (h_idx + i - 1 < H)
            ok_w = (w_idx + j - 1 >= 0) & (w_idx + j - 1 < W)
            masks.append((ok_h & ok_w).astype(jnp.float32))
    mask_arr = jnp.stack(masks, axis=0)                          # (9, Mb)

    kernel = _make_dense_layer_kernel(H, W, G, Mb, _PAD, chunk)

    itemsize = jnp.dtype(compute_dtype).itemsize
    flops = 2 * N * hw * Cmid * (Cin + 9 * G)
    bytes_accessed = (N * hw * Cin * itemsize + N * hw * G * 4
                      + (Cmid * Cin + 9 * G * Cmid) * itemsize
                      + (2 * Cin + Cmid) * 4 + 9 * Mb * 4)
    vmem_bytes = (2 * Cin * Mb * itemsize            # double-buffered input block
                  + 2 * G * Mb * 4                   # double-buffered output block
                  + 9 * Mb * 4                       # masks
                  + (Cmid * Cin + 9 * G * Cmid) * itemsize
                  + (2 * Cin + Cmid) * 4
                  + 9 * G * (Mb + 2 * _PAD) * 4)     # tap scratch
    vmem_limit = int(min(100 * 1024 * 1024, max(2 * vmem_bytes, 4 * 1024 * 1024)))

    out2d = pl.pallas_call(
        kernel,
        out_shape=jax.ShapeDtypeStruct((G, N * hw), jnp.float32),
        grid_spec=pltpu.PrefetchScalarGridSpec(
            num_scalar_prefetch=0,
            grid=(N // Nb,),
            in_specs=[
                pl.BlockSpec((Cin, Mb), lambda n: (0, n)),
                pl.BlockSpec((Cin, 1), lambda n: (0, 0)),
                pl.BlockSpec((Cin, 1), lambda n: (0, 0)),
                pl.BlockSpec((Cmid, Cin), lambda n: (0, 0)),
                pl.BlockSpec((Cmid, 1), lambda n: (0, 0)),
                pl.BlockSpec((9 * G, Cmid), lambda n: (0, 0)),
                pl.BlockSpec((9, Mb), lambda n: (0, 0)),
            ],
            out_specs=pl.BlockSpec((G, Mb), lambda n: (0, n)),
            scratch_shapes=[pltpu.VMEM((9 * G, Mb + 2 * _PAD), jnp.float32)],
        ),
        compiler_params=pltpu.CompilerParams(
            dimension_semantics=("parallel",),
            vmem_limit_bytes=vmem_limit),
        cost_estimate=pl.CostEstimate(flops=flops, transcendentals=0,
                                      bytes_accessed=bytes_accessed),
    )(x2d, s1.reshape(Cin, 1), b1.reshape(Cin, 1), w1p,
      b2.reshape(Cmid, 1), w2s, mask_arr)

    # TODO(synk): F.dropout with drop_rate > 0 in training mode is not applied;
    # this matches eval mode / drop_rate=0 where dropout is the identity.
    return jnp.transpose(out2d.reshape(G, N, H, W), (1, 0, 2, 3))   # NCHW


def _reference_forward(prev_features_nchw, params, eps=1e-5):
    """Pure-JAX (lax.conv) reference of the PyTorch forward (eval-mode BN)."""
    x = jnp.concatenate(prev_features_nchw, axis=1)
    g1, be1, m1, v1 = params["bn1"]
    g2, be2, m2, v2 = params["bn2"]

    def bn(x, g, b, m, v):
        return (x - m[None, :, None, None]) / jnp.sqrt(v[None, :, None, None] + eps) \
            * g[None, :, None, None] + b[None, :, None, None]

    dn = ("NCHW", "OIHW", "NCHW")
    y = jnp.maximum(bn(x, g1, be1, m1, v1), 0.0)
    y = lax.conv_general_dilated(y, params["conv1_w"], (1, 1), "VALID",
                                 dimension_numbers=dn)
    y = jnp.maximum(bn(y, g2, be2, m2, v2), 0.0)
    y = lax.conv_general_dilated(y, params["conv2_w"], (1, 1), ((1, 1), (1, 1)),
                                 dimension_numbers=dn)
    return y


if __name__ == "__main__":
    # Small DenseNet-ish config: previous features of 16 and 8 channels,
    # growth_rate=8, bn_size=4  ->  Cin=24, Cmid=32, G=8, 16x16 spatial, batch 4.
    N, H, W = 4, 16, 16
    c_prev = (16, 8)
    growth_rate, bn_size = 8, 4
    Cin = sum(c_prev)
    Cmid = bn_size * growth_rate

    key = jax.random.PRNGKey(0)
    ks = jax.random.split(key, 12)
    prev_features = [
        jax.random.normal(ks[0], (N, c_prev[0], H, W), jnp.float32),
        jax.random.normal(ks[1], (N, c_prev[1], H, W), jnp.float32),
    ]
    params = {
        "bn1": (jax.random.uniform(ks[2], (Cin,), jnp.float32, 0.5, 1.5),   # gamma
                jax.random.normal(ks[3], (Cin,), jnp.float32) * 0.1,        # beta
                jax.random.normal(ks[4], (Cin,), jnp.float32) * 0.1,        # running_mean
                jax.random.uniform(ks[5], (Cin,), jnp.float32, 0.5, 1.5)),  # running_var
        "conv1_w": jax.random.normal(ks[6], (Cmid, Cin, 1, 1), jnp.float32)
                   * (1.0 / math.sqrt(Cin)),
        "bn2": (jax.random.uniform(ks[7], (Cmid,), jnp.float32, 0.5, 1.5),
                jax.random.normal(ks[8], (Cmid,), jnp.float32) * 0.1,
                jax.random.normal(ks[9], (Cmid,), jnp.float32) * 0.1,
                jax.random.uniform(ks[10], (Cmid,), jnp.float32, 0.5, 1.5)),
        "conv2_w": jax.random.normal(ks[11], (growth_rate, Cmid, 3, 3), jnp.float32)
                   * (1.0 / math.sqrt(9 * Cmid)),
    }

    ref = jax.block_until_ready(_reference_forward(prev_features, params))

    # 1) f32 MXU path: tight structural/numerical check vs the lax.conv reference.
    out_f32 = jax.block_until_ready(
        dense_layer_forward(prev_features, params, compute_dtype=jnp.float32))
    assert out_f32.shape == (N, growth_rate, H, W), out_f32.shape
    assert jnp.allclose(out_f32, ref, atol=1e-3, rtol=1e-3), \
        float(jnp.max(jnp.abs(out_f32 - ref)))

    # 2) bf16 MXU path (default): looser tolerance, deviation comes only from the
    #    bf16 casts of activations/weights at the matmul boundaries (f32 accum).
    out_bf16 = jax.block_until_ready(dense_layer_forward(prev_features, params))
    assert out_bf16.shape == (N, growth_rate, H, W), out_bf16.shape
    assert jnp.allclose(out_bf16, ref, atol=2e-1, rtol=1e-1), \
        float(jnp.max(jnp.abs(out_bf16 - ref)))

    print("KERNEL_OK")
</pallas_src>

<mosaic_0001>
module attributes {stable_mosaic.version = 11 : i64} {
  func.func @kernel(%arg0: i32, %arg1: memref<24x256xf32, #tpu.memory_space<vmem>>, %arg2: memref<24x1xf32, #tpu.memory_space<vmem>>, %arg3: memref<24x1xf32, #tpu.memory_space<vmem>>, %arg4: memref<32x24xf32, #tpu.memory_space<vmem>>, %arg5: memref<32x1xf32, #tpu.memory_space<vmem>>, %arg6: memref<72x32xf32, #tpu.memory_space<vmem>>, %arg7: memref<9x256xf32, #tpu.memory_space<vmem>>, %arg8: memref<8x256xf32, #tpu.memory_space<vmem>>, %arg9: memref<72x512xf32, #tpu.memory_space<vmem>>) attributes {dimension_semantics = [#tpu.dimension_semantics<parallel>], iteration_bounds = array<i64: 4>, scalar_prefetch = 0 : i64, scratch_operands = 1 : i64, tpu.core_type = #tpu.core_type<tc>, window_params = [{transform_indices = @transform_0, window_bounds = array<i64: 24, 256>}, {pipeline_mode = #tpu.pipeline_mode<synchronous>, transform_indices = @transform_1, window_bounds = array<i64: 24, 1>}, {pipeline_mode = #tpu.pipeline_mode<synchronous>, transform_indices = @transform_2, window_bounds = array<i64: 24, 1>}, {pipeline_mode = #tpu.pipeline_mode<synchronous>, transform_indices = @transform_3, window_bounds = array<i64: 32, 24>}, {pipeline_mode = #tpu.pipeline_mode<synchronous>, transform_indices = @transform_4, window_bounds = array<i64: 32, 1>}, {pipeline_mode = #tpu.pipeline_mode<synchronous>, transform_indices = @transform_5, window_bounds = array<i64: 72, 32>}, {pipeline_mode = #tpu.pipeline_mode<synchronous>, transform_indices = @transform_6, window_bounds = array<i64: 9, 256>}, {transform_indices = @transform_7, window_bounds = array<i64: 8, 256>}]} {
    %c0 = arith.constant 0 : index
    %c0_0 = arith.constant 0 : index
    %0 = vector.load %arg1[%c0, %c0_0] : memref<24x256xf32, #tpu.memory_space<vmem>>, vector<24x256xf32>
    %c0_1 = arith.constant 0 : index
    %c0_2 = arith.constant 0 : index
    %1 = vector.load %arg2[%c0_1, %c0_2] : memref<24x1xf32, #tpu.memory_space<vmem>>, vector<24x1xf32>
    %2 = vector.broadcast %1 : vector<24x1xf32> to vector<24x256xf32>
    %3 = arith.mulf %0, %2 : vector<24x256xf32>
    %c0_3 = arith.constant 0 : index
    %c0_4 = arith.constant 0 : index
    %4 = vector.load %arg3[%c0_3, %c0_4] : memref<24x1xf32, #tpu.memory_space<vmem>>, vector<24x1xf32>
    %5 = vector.broadcast %4 : vector<24x1xf32> to vector<24x256xf32>
    %6 = arith.addf %3, %5 : vector<24x256xf32>
    %cst = arith.constant 0.000000e+00 : f32
    %7 = vector.broadcast %cst : f32 to vector<24x256xf32>
    %8 = arith.maximumf %6, %7 : vector<24x256xf32>
    %c0_5 = arith.constant 0 : index
    %c0_6 = arith.constant 0 : index
    %9 = vector.load %arg4[%c0_5, %c0_6] : memref<32x24xf32, #tpu.memory_space<vmem>>, vector<32x24xf32>
    %cst_7 = arith.constant dense<0.000000e+00> : vector<32x256xf32>
    %10 = tpu.matmul %9, %8, %cst_7 {dimension_numbers = #tpu.dot_dimension_numbers<[1], [0], [0], [1], [0, 0, 1, 1], [], []>} : vector<32x24xf32>, vector<24x256xf32>, vector<32x256xf32> -> vector<32x256xf32>
    %c0_8 = arith.constant 0 : index
    %c0_9 = arith.constant 0 : index
    %11 = vector.load %arg5[%c0_8, %c0_9] : memref<32x1xf32, #tpu.memory_space<vmem>>, vector<32x1xf32>
    %12 = vector.broadcast %11 : vector<32x1xf32> to vector<32x256xf32>
    %13 = arith.addf %10, %12 : vector<32x256xf32>
    %cst_10 = arith.constant 0.000000e+00 : f32
    %14 = vector.broadcast %cst_10 : f32 to vector<32x256xf32>
    %15 = arith.maximumf %13, %14 : vector<32x256xf32>
    %c0_11 = arith.constant 0 : index
    %c0_12 = arith.constant 0 : index
    %16 = vector.load %arg6[%c0_11, %c0_12] : memref<72x32xf32, #tpu.memory_space<vmem>>, vector<72x32xf32>
    %cst_13 = arith.constant dense<0.000000e+00> : vector<72x256xf32>
    %17 = tpu.matmul %16, %15, %cst_13 {dimension_numbers = #tpu.dot_dimension_numbers<[1], [0], [0], [1], [0, 0, 1, 1], [], []>} : vector<72x32xf32>, vector<32x256xf32>, vector<72x256xf32> -> vector<72x256xf32>
    %cst_14 = arith.constant 0.000000e+00 : f32
    %18 = vector.broadcast %cst_14 : f32 to vector<72x128xf32>
    %c0_15 = arith.constant 0 : index
    %c0_16 = arith.constant 0 : index
    %19 = vector.load %arg9[%c0_15, %c0_16] : memref<72x512xf32, #tpu.memory_space<vmem>>, vector<72x128xf32>
    tpu.vector_store %arg9[%c0_15, %c0_16], %18 {strides = array<i32>} : memref<72x512xf32, #tpu.memory_space<vmem>>, vector<72x128xf32>,
    %cst_17 = arith.constant 0.000000e+00 : f32
    %20 = vector.broadcast %cst_17 : f32 to vector<72x128xf32>
    %c0_18 = arith.constant 0 : index
    %c384 = arith.constant 384 : index
    %21 = vector.load %arg9[%c0_18, %c384] : memref<72x512xf32, #tpu.memory_space<vmem>>, vector<72x128xf32>
    tpu.vector_store %arg9[%c0_18, %c384], %20 {strides = array<i32>} : memref<72x512xf32, #tpu.memory_space<vmem>>, vector<72x128xf32>,
    %c0_19 = arith.constant 0 : index
    %c128 = arith.constant 128 : index
    %22 = vector.load %arg9[%c0_19, %c128] : memref<72x512xf32, #tpu.memory_space<vmem>>, vector<72x256xf32>
    tpu.vector_store %arg9[%c0_19, %c128], %17 {strides = array<i32>} : memref<72x512xf32, #tpu.memory_space<vmem>>, vector<72x256xf32>,
    %cst_20 = arith.constant 0.000000e+00 : f32
    %23 = vector.broadcast %cst_20 : f32 to vector<8x256xf32>
    %c0_21 = arith.constant 0 : index
    %c111 = arith.constant 111 : index
    %24 = vector.load %arg9[%c0_21, %c111] : memref<72x512xf32, #tpu.memory_space<vmem>>, vector<8x256xf32>
    %c0_22 = arith.constant 0 : index
    %c0_23 = arith.constant 0 : index
    %25 = vector.load %arg7[%c0_22, %c0_23] : memref<9x256xf32, #tpu.memory_space<vmem>>, vector<1x256xf32>
    %26 = vector.broadcast %25 : vector<1x256xf32> to vector<8x256xf32>
    %27 = arith.mulf %26, %24 : vector<8x256xf32>
    %28 = arith.addf %23, %27 : vector<8x256xf32>
    %c8 = arith.constant 8 : index
    %c112 = arith.constant 112 : index
    %29 = vector.load %arg9[%c8, %c112] : memref<72x512xf32, #tpu.memory_space<vmem>>, vector<8x256xf32>
    %c1 = arith.constant 1 : index
    %c0_24 = arith.constant 0 : index
    %30 = vector.load %arg7[%c1, %c0_24] : memref<9x256xf32, #tpu.memory_space<vmem>>, vector<1x256xf32>
    %31 = vector.broadcast %30 : vector<1x256xf32> to vector<8x256xf32>
    %32 = arith.mulf %31, %29 : vector<8x256xf32>
    %33 = arith.addf %28, %32 : vector<8x256xf32>
    %c16 = arith.constant 16 : index
    %c113 = arith.constant 113 : index
    %34 = vector.load %arg9[%c16, %c113] : memref<72x512xf32, #tpu.memory_space<vmem>>, vector<8x256xf32>
    %c2 = arith.constant 2 : index
    %c0_25 = arith.constant 0 : index
    %35 = vector.load %arg7[%c2, %c0_25] : memref<9x256xf32, #tpu.memory_space<vmem>>, vector<1x256xf32>
    %36 = vector.broadcast %35 : vector<1x256xf32> to vector<8x256xf32>
    %37 = arith.mulf %36, %34 : vector<8x256xf32>
    %38 = arith.addf %33, %37 : vector<8x256xf32>
    %c24 = arith.constant 24 : index
    %c127 = arith.constant 127 : index
    %39 = vector.load %arg9[%c24, %c127] : memref<72x512xf32, #tpu.memory_space<vmem>>, vector<8x256xf32>
    %c3 = arith.constant 3 : index
    %c0_26 = arith.constant 0 : index
    %40 = vector.load %arg7[%c3, %c0_26] : memref<9x256xf32, #tpu.memory_space<vmem>>, vector<1x256xf32>
    %41 = vector.broadcast %40 : vector<1x256xf32> to vector<8x256xf32>
    %42 = arith.mulf %41, %39 : vector<8x256xf32>
    %43 = arith.addf %38, %42 : vector<8x256xf32>
    %c32 = arith.constant 32 : index
    %c128_27 = arith.constant 128 : index
    %44 = vector.load %arg9[%c32, %c128_27] : memref<72x512xf32, #tpu.memory_space<vmem>>, vector<8x256xf32>
    %c4 = arith.constant 4 : index
    %c0_28 = arith.constant 0 : index
    %45 = vector.load %arg7[%c4, %c0_28] : memref<9x256xf32, #tpu.memory_space<vmem>>, vector<1x256xf32>
    %46 = vector.broadcast %45 : vector<1x256xf32> to vector<8x256xf32>
    %47 = arith.mulf %46, %44 : vector<8x256xf32>
    %48 = arith.addf %43, %47 : vector<8x256xf32>
    %c40 = arith.constant 40 : index
    %c129 = arith.constant 129 : index
    %49 = vector.load %arg9[%c40, %c129] : memref<72x512xf32, #tpu.memory_space<vmem>>, vector<8x256xf32>
    %c5 = arith.constant 5 : index
    %c0_29 = arith.constant 0 : index
    %50 = vector.load %arg7[%c5, %c0_29] : memref<9x256xf32, #tpu.memory_space<vmem>>, vector<1x256xf32>
    %51 = vector.broadcast %50 : vector<1x256xf32> to vector<8x256xf32>
    %52 = arith.mulf %51, %49 : vector<8x256xf32>
    %53 = arith.addf %48, %52 : vector<8x256xf32>
    %c48 = arith.constant 48 : index
    %c143 = arith.constant 143 : index
    %54 = vector.load %arg9[%c48, %c143] : memref<72x512xf32, #tpu.memory_space<vmem>>, vector<8x256xf32>
    %c6 = arith.constant 6 : index
    %c0_30 = arith.constant 0 : index
    %55 = vector.load %arg7[%c6, %c0_30] : memref<9x256xf32, #tpu.memory_space<vmem>>, vector<1x256xf32>
    %56 = vector.broadcast %55 : vector<1x256xf32> to vector<8x256xf32>
    %57 = arith.mulf %56, %54 : vector<8x256xf32>
    %58 = arith.addf %53, %57 : vector<8x256xf32>
    %c56 = arith.constant 56 : index
    %c144 = arith.constant 144 : index
    %59 = vector.load %arg9[%c56, %c144] : memref<72x512xf32, #tpu.memory_space<vmem>>, vector<8x256xf32>
    %c7 = arith.constant 7 : index
    %c0_31 = arith.constant 0 : index
    %60 = vector.load %arg7[%c7, %c0_31] : memref<9x256xf32, #tpu.memory_space<vmem>>, vector<1x256xf32>
    %61 = vector.broadcast %60 : vector<1x256xf32> to vector<8x256xf32>
    %62 = arith.mulf %61, %59 : vector<8x256xf32>
    %63 = arith.addf %58, %62 : vector<8x256xf32>
    %c64 = arith.constant 64 : index
    %c145 = arith.constant 145 : index
    %64 = vector.load %arg9[%c64, %c145] : memref<72x512xf32, #tpu.memory_space<vmem>>, vector<8x256xf32>
    %c8_32 = arith.constant 8 : index
    %c0_33 = arith.constant 0 : index
    %65 = vector.load %arg7[%c8_32, %c0_33] : memref<9x256xf32, #tpu.memory_space<vmem>>, vector<1x256xf32>
    %66 = vector.broadcast %65 : vector<1x256xf32> to vector<8x256xf32>
    %67 = arith.mulf %66, %64 : vector<8x256xf32>
    %68 = arith.addf %63, %67 : vector<8x256xf32>
    %c0_34 = arith.constant 0 : index
    %c0_35 = arith.constant 0 : index
    %69 = vector.load %arg8[%c0_34, %c0_35] : memref<8x256xf32, #tpu.memory_space<vmem>>, vector<8x256xf32>
    tpu.vector_store %arg8[%c0_34, %c0_35], %68 {strides = array<i32>} : memref<8x256xf32, #tpu.memory_space<vmem>>, vector<8x256xf32>,
    return
  }
  func.func @transform_0(%arg0: i32) -> (i32, i32) {
    %c0_i32 = arith.constant 0 : i32
    %c0_i32_0 = arith.constant 0 : i32
    return %c0_i32, %arg0 : i32, i32
  }
  func.func @transform_1(%arg0: i32) -> (i32, i32) {
    %c0_i32 = arith.constant 0 : i32
    %c0_i32_0 = arith.constant 0 : i32
    %c0_i32_1 = arith.constant 0 : i32
    return %c0_i32, %c0_i32_0 : i32, i32
  }
  func.func @transform_2(%arg0: i32) -> (i32, i32) {
    %c0_i32 = arith.constant 0 : i32
    %c0_i32_0 = arith.constant 0 : i32
    %c0_i32_1 = arith.constant 0 : i32
    return %c0_i32, %c0_i32_0 : i32, i32
  }
  func.func @transform_3(%arg0: i32) -> (i32, i32) {
    %c0_i32 = arith.constant 0 : i32
    %c0_i32_0 = arith.constant 0 : i32
    %c0_i32_1 = arith.constant 0 : i32
    return %c0_i32, %c0_i32_0 : i32, i32
  }
  func.func @transform_4(%arg0: i32) -> (i32, i32) {
    %c0_i32 = arith.constant 0 : i32
    %c0_i32_0 = arith.constant 0 : i32
    %c0_i32_1 = arith.constant 0 : i32
    return %c0_i32, %c0_i32_0 : i32, i32
  }
  func.func @transform_5(%arg0: i32) -> (i32, i32) {
    %c0_i32 = arith.constant 0 : i32
    %c0_i32_0 = arith.constant 0 : i32
    %c0_i32_1 = arith.constant 0 : i32
    return %c0_i32, %c0_i32_0 : i32, i32
  }
  func.func @transform_6(%arg0: i32) -> (i32, i32) {
    %c0_i32 = arith.constant 0 : i32
    %c0_i32_0 = arith.constant 0 : i32
    %c0_i32_1 = arith.constant 0 : i32
    return %c0_i32, %c0_i32_0 : i32, i32
  }
  func.func @transform_7(%arg0: i32) -> (i32, i32) {
    %c0_i32 = arith.constant 0 : i32
    %c0_i32_0 = arith.constant 0 : i32
    return %c0_i32, %arg0 : i32, i32
  }
}

</mosaic_0001>

<llo_original>
// kernel: tpu_custom_call.1
$region0: #{tpu_custom_call.1}
  #allocation0 [shape = 'u32[]', space=smem, size = 0x4, offset = 0x4, fixed_abs, tag = 'smem constant byte address 0x4 - core index']
  #allocation1 [shape = 'u32[72,128]{1,0:T(1,128)}', space=vmem, size = 0x9000, scoped, tag = 'internal scratch']
  #allocation2 [shape = 'f32[72,512]{1,0:T(8,128)}', space=vmem, size = 0x24000, scoped, tag = 'scratch operand']
  %s0 = inlined_call_operand.vmem [shape: f32[24,1024], index: 0, kind: input, shape index: {}]
  %s1 = inlined_call_operand.vmem [shape: f32[24,1], index: 1, kind: input, shape index: {}]
  %s2 = inlined_call_operand.vmem [shape: f32[24,1], index: 2, kind: input, shape index: {}]
  %s3 = inlined_call_operand.vmem [shape: f32[32,24], index: 3, kind: input, shape index: {}]
  %s4 = inlined_call_operand.vmem [shape: f32[32,1], index: 4, kind: input, shape index: {}]
  %s5 = inlined_call_operand.vmem [shape: f32[72,32], index: 5, kind: input, shape index: {}]
  %s6 = inlined_call_operand.vmem [shape: f32[9,256], index: 6, kind: input, shape index: {}]
  %s7 = inlined_call_operand.hbm [shape: f32[8,1024], index: 7, kind: output, shape index: {}]
  %s8 = sld [smem:[#allocation0]]
  $region84: #{tpu_custom_call.1} parent=0
    _
  %s10 = ssub.s32 1, %s8
  %s11 = scalar_select 0, %s10, %s8
  $region1: #{tpu_custom_call.1} parent=0
    #allocation3 [shape = 'u8[49152]{0}', space=vmem, size = 0xc000, scoped, tag = 'input window, operand 0']
    #allocation4 [shape = 'u8[16384]{0}', space=vmem, size = 0x4000, scoped, tag = 'output window, operand 0']
    #allocation5 [shape = 's32[2]{0}', space=sflag, size = 0x8, scoped, tag = 'scoped memory for tpu_custom_call.1']
    %12 = vsyncpa [#allocation5], 0
    %s13 = scalar_lea.sflag [#allocation5], 1
    %14 = vsyncpa %s13, 0
    loop: start=0, step=1, limit=6
    $region2: #{tpu_custom_call.1} parent=1 // loop_pre_header
      _
    $region3: #{tpu_custom_call.1} parent=1 // loop_header
      %s16 = sphi 0, %s20
      %p17 = scmp.ge.s32.totalorder %s16, 6
      %s26 = sphi 0, %s28
      %s29 = sphi 0, %s26
      %s30 = sphi 0, %s29
      %s46 = sphi 0, %s30
      %s50 = sphi 0, %s50
      %s52 = sphi 0, %s50
      %s53 = sphi 0, %s52
      %s67 = sphi 0, %s53
      %s71 = sphi 0, %s71
      %s73 = sphi 0, %s71
      %s74 = sphi 0, %s73
      %s88 = sphi 0, %s74
      %s92 = sphi 0, %s92
      %s94 = sphi 0, %s92
      %s95 = sphi 0, %s94
      %s109 = sphi 0, %s95
      %s113 = sphi 0, %s113
      %s115 = sphi 0, %s113
      %s116 = sphi 0, %s115
      %s130 = sphi 0, %s116
      %s134 = sphi 0, %s134
      %s136 = sphi 0, %s134
      %s137 = sphi 0, %s136
      %s151 = sphi 0, %s137
      %s155 = sphi 0, %s155
      %s157 = sphi 0, %s155
      %s158 = sphi 0, %s157
      %s172 = sphi 0, %s158
      %s178 = sphi 0, %s180
      %s181 = sphi 0, %s178
      %s182 = sphi 0, %s181
      %s198 = sphi 0, %s182
    $region4: #{tpu_custom_call.1} parent=1 // loop_header_branch
      %19 = sbr.rel (%p17) target = $region8
    $region5: #{tpu_custom_call.1} parent=1 // loop_body
      %s21 = ssub.s32 %s16, 1
      %s22 = ssub.s32 %s16, 2
      %s23 = sadd.s32 %s16, 1
      %s24 = ssub.s32 %s16, %s23
      %p25 = scmp.eq.s32.totalorder %s24, 0
      %s27 = sadd.s32 %s26, 1
      %s28 = scalar_select %p25, %s26, %s27
      %p31 = pneg %p25
      %p32 = scmp.eq.s32.totalorder %s16, 3
      %p33 = por %p31, %p32
      %p34 = scmp.ne.s32.totalorder %s26, %s29
      %p35 = scmp.eq.s32.totalorder %s16, 0
      %p36 = por %p34, %p35
      %p37 = scmp.ne.s32.totalorder %s26, %s29
      %p38 = scmp.eq.s32.totalorder %s21, 3
      %p39 = por %p37, %p38
      %p40 = scmp.ne.s32.totalorder %s29, %s30
      %p41 = scmp.eq.s32.totalorder %s21, 0
      %p42 = por %p40, %p41
      %p43 = scmp.ne.s32.totalorder %s29, %s30
      %p44 = scmp.eq.s32.totalorder %s22, 3
      %p45 = por %p43, %p44
      %p47 = scmp.ne.s32.totalorder %s30, %s46
      %p48 = scmp.eq.s32.totalorder %s22, 0
      %p49 = por %p47, %p48
      %s51 = sadd.s32 %s50, 1
      %p54 = scmp.eq.s32.totalorder %s16, 3
      %p55 = scmp.ne.s32.totalorder %s50, %s52
      %p56 = scmp.eq.s32.totalorder %s16, 0
      %p57 = por %p55, %p56
      %p58 = scmp.ne.s32.totalorder %s50, %s52
      %p59 = scmp.eq.s32.totalorder %s21, 3
      %p60 = por %p58, %p59
      %p61 = scmp.ne.s32.totalorder %s52, %s53
      %p62 = scmp.eq.s32.totalorder %s21, 0
      %p63 = por %p61, %p62
      %p64 = scmp.ne.s32.totalorder %s52, %s53
      %p65 = scmp.eq.s32.totalorder %s22, 3
      %p66 = por %p64, %p65
      %p68 = scmp.ne.s32.totalorder %s53, %s67
      %p69 = scmp.eq.s32.totalorder %s22, 0
      %p70 = por %p68, %p69
      %s72 = sadd.s32 %s71, 1
      %p75 = scmp.eq.s32.totalorder %s16, 3
      %p76 = scmp.ne.s32.totalorder %s71, %s73
      %p77 = scmp.eq.s32.totalorder %s16, 0
      %p78 = por %p76, %p77
      %p79 = scmp.ne.s32.totalorder %s71, %s73
      %p80 = scmp.eq.s32.totalorder %s21, 3
      %p81 = por %p79, %p80
      %p82 = scmp.ne.s32.totalorder %s73, %s74
      %p83 = scmp.eq.s32.totalorder %s21, 0
      %p84 = por %p82, %p83
      %p85 = scmp.ne.s32.totalorder %s73, %s74
      %p86 = scmp.eq.s32.totalorder %s22, 3
      %p87 = por %p85, %p86
      %p89 = scmp.ne.s32.totalorder %s74, %s88
      %p90 = scmp.eq.s32.totalorder %s22, 0
      %p91 = por %p89, %p90
      %s93 = sadd.s32 %s92, 1
      %p96 = scmp.eq.s32.totalorder %s16, 3
      %p97 = scmp.ne.s32.totalorder %s92, %s94
      %p98 = scmp.eq.s32.totalorder %s16, 0
      %p99 = por %p97, %p98
      %p100 = scmp.ne.s32.totalorder %s92, %s94
      %p101 = scmp.eq.s32.totalorder %s21, 3
      %p102 = por %p100, %p101
      %p103 = scmp.ne.s32.totalorder %s94, %s95
      %p104 = scmp.eq.s32.totalorder %s21, 0
      %p105 = por %p103, %p104
      %p106 = scmp.ne.s32.totalorder %s94, %s95
      %p107 = scmp.eq.s32.totalorder %s22, 3
      %p108 = por %p106, %p107
      %p110 = scmp.ne.s32.totalorder %s95, %s109
      %p111 = scmp.eq.s32.totalorder %s22, 0
      %p112 = por %p110, %p111
      %s114 = sadd.s32 %s113, 1
      %p117 = scmp.eq.s32.totalorder %s16, 3
      %p118 = scmp.ne.s32.totalorder %s113, %s115
      %p119 = scmp.eq.s32.totalorder %s16, 0
      %p120 = por %p118, %p119
      %p121 = scmp.ne.s32.totalorder %s113, %s115
      %p122 = scmp.eq.s32.totalorder %s21, 3
      %p123 = por %p121, %p122
      %p124 = scmp.ne.s32.totalorder %s115, %s116
      %p125 = scmp.eq.s32.totalorder %s21, 0
      %p126 = por %p124, %p125
      %p127 = scmp.ne.s32.totalorder %s115, %s116
      %p128 = scmp.eq.s32.totalorder %s22, 3
      %p129 = por %p127, %p128
      %p131 = scmp.ne.s32.totalorder %s116, %s130
      %p132 = scmp.eq.s32.totalorder %s22, 0
      %p133 = por %p131, %p132
      %s135 = sadd.s32 %s134, 1
      %p138 = scmp.eq.s32.totalorder %s16, 3
      %p139 = scmp.ne.s32.totalorder %s134, %s136
      %p140 = scmp.eq.s32.totalorder %s16, 0
      %p141 = por %p139, %p140
      %p142 = scmp.ne.s32.totalorder %s134, %s136
      %p143 = scmp.eq.s32.totalorder %s21, 3
      %p144 = por %p142, %p143
      %p145 = scmp.ne.s32.totalorder %s136, %s137
      %p146 = scmp.eq.s32.totalorder %s21, 0
      %p147 = por %p145, %p146
      %p148 = scmp.ne.s32.totalorder %s136, %s137
      %p149 = scmp.eq.s32.totalorder %s22, 3
      %p150 = por %p148, %p149
      %p152 = scmp.ne.s32.totalorder %s137, %s151
      %p153 = scmp.eq.s32.totalorder %s22, 0
      %p154 = por %p152, %p153
      %s156 = sadd.s32 %s155, 1
      %p159 = scmp.eq.s32.totalorder %s16, 3
      %p160 = scmp.ne.s32.totalorder %s155, %s157
      %p161 = scmp.eq.s32.totalorder %s16, 0
      %p162 = por %p160, %p161
      %p163 = scmp.ne.s32.totalorder %s155, %s157
      %p164 = scmp.eq.s32.totalorder %s21, 3
      %p165 = por %p163, %p164
      %p166 = scmp.ne.s32.totalorder %s157, %s158
      %p167 = scmp.eq.s32.totalorder %s21, 0
      %p168 = por %p166, %p167
      %p169 = scmp.ne.s32.totalorder %s157, %s158
      %p170 = scmp.eq.s32.totalorder %s22, 3
      %p171 = por %p169, %p170
      %p173 = scmp.ne.s32.totalorder %s158, %s172
      %p174 = scmp.eq.s32.totalorder %s22, 0
      %p175 = por %p173, %p174
      %s176 = ssub.s32 %s16, %s23
      %p177 = scmp.eq.s32.totalorder %s176, 0
      %s179 = sadd.s32 %s178, 1
      %s180 = scalar_select %p177, %s178, %s179
      %p183 = pneg %p177
      %p184 = scmp.eq.s32.totalorder %s16, 3
      %p185 = por %p183, %p184
      %p186 = scmp.ne.s32.totalorder %s178, %s181
      %p187 = scmp.eq.s32.totalorder %s16, 0
      %p188 = por %p186, %p187
      %p189 = scmp.ne.s32.totalorder %s178, %s181
      %p190 = scmp.eq.s32.totalorder %s21, 3
      %p191 = por %p189, %p190
      %p192 = scmp.ne.s32.totalorder %s181, %s182
      %p193 = scmp.eq.s32.totalorder %s21, 0
      %p194 = por %p192, %p193
      %p195 = scmp.ne.s32.totalorder %s181, %s182
      %p196 = scmp.eq.s32.totalorder %s22, 3
      %p197 = por %p195, %p196
      %p199 = scmp.ne.s32.totalorder %s182, %s198
      %p200 = scmp.eq.s32.totalorder %s22, 0
      %p201 = por %p199, %p200
      %p202 = scmp.le.s32.totalorder 1, %s16
      %p203 = scmp.lt.s32.totalorder %s16, 5
      %p204 = pnand %p202, %p203
      %p205 = pneg %p204
      // Predicated region
      $region9: #{tpu_custom_call.1} parent=5 // pred_check
        _
      $region10: #{tpu_custom_call.1} parent=5 // pred_check_branch
        %207 = sbr.rel (%p204) target = $region12
      $region11: #{tpu_custom_call.1} parent=5 // pred_region
        %s208 = ssub.s32 %s16, 1
        // Predicated region
        $region13: #{tpu_custom_call.1} parent=11 // pred_check
          %p209 = pneg %p63
        $region14: #{tpu_custom_call.1} parent=11 // pred_check_branch
          %211 = sbr.rel (%p209) target = $region16
        $region15: #{tpu_custom_call.1} parent=11 // pred_region
          _
        $region16: #{tpu_custom_call.1} parent=11 // pred_fallthru
          _
        // Predicated region
        $region17: #{tpu_custom_call.1} parent=11 // pred_check
          %p212 = pneg %p84
        $region18: #{tpu_custom_call.1} parent=11 // pred_check_branch
          %214 = sbr.rel (%p212) target = $region20
        $region19: #{tpu_custom_call.1} parent=11 // pred_region
          _
        $region20: #{tpu_custom_call.1} parent=11 // pred_fallthru
          _
        // Predicated region
        $region21: #{tpu_custom_call.1} parent=11 // pred_check
          %p215 = pneg %p105
        $region22: #{tpu_custom_call.1} parent=11 // pred_check_branch
          %217 = sbr.rel (%p215) target = $region24
        $region23: #{tpu_custom_call.1} parent=11 // pred_region
          _
        $region24: #{tpu_custom_call.1} parent=11 // pred_fallthru
          _
        // Predicated region
        $region25: #{tpu_custom_call.1} parent=11 // pred_check
          %p218 = pneg %p126
        $region26: #{tpu_custom_call.1} parent=11 // pred_check_branch
          %220 = sbr.rel (%p218) target = $region28
        $region27: #{tpu_custom_call.1} parent=11 // pred_region
          _
        $region28: #{tpu_custom_call.1} parent=11 // pred_fallthru
          _
        // Predicated region
        $region29: #{tpu_custom_call.1} parent=11 // pred_check
          %p221 = pneg %p147
        $region30: #{tpu_custom_call.1} parent=11 // pred_check_branch
          %223 = sbr.rel (%p221) target = $region32
        $region31: #{tpu_custom_call.1} parent=11 // pred_region
          _
        $region32: #{tpu_custom_call.1} parent=11 // pred_fallthru
          _
        // Predicated region
        $region33: #{tpu_custom_call.1} parent=11 // pred_check
          %p224 = pneg %p168
        $region34: #{tpu_custom_call.1} parent=11 // pred_check_branch
          %226 = sbr.rel (%p224) target = $region36
        $region35: #{tpu_custom_call.1} parent=11 // pred_region
          _
        $region36: #{tpu_custom_call.1} parent=11 // pred_fallthru
          _
      $region12: #{tpu_custom_call.1} parent=5 // pred_fallthru
        _
      %p227 = scmp.lt.s32.totalorder %s16, 4
      // Predicated region
      $region37: #{tpu_custom_call.1} parent=5 // pred_check
        %p228 = pneg %p227
      $region38: #{tpu_custom_call.1} parent=5 // pred_check_branch
        %230 = sbr.rel (%p228) target = $region40
      $region39: #{tpu_custom_call.1} parent=5 // pred_region
        // Predicated region
        $region41: #{tpu_custom_call.1} parent=39 // pred_check
          %p231 = pneg %p36
        $region42: #{tpu_custom_call.1} parent=39 // pred_check_branch
          %233 = sbr.rel (%p231) target = $region44
        $region43: #{tpu_custom_call.1} parent=39 // pred_region
          %s234 = sand.u32 %s26, 1
          %s235 = sand.u32 %s26, 1
          %s236 = smul.addr %s235, 48
          %s237 = scalar_lea.vmem [#allocation3], %s236
          %s238 = smul.u32 2, %s16
          %s239 = smul.addr %s238, 8
          %s240 = scalar_lea.vmem %s0, %s239
          // Predicated region
          $region45: #{tpu_custom_call.1} parent=43 // pred_check
            _
          $region46: #{tpu_custom_call.1} parent=43 // pred_check_branch
            %242 = sbr.rel (0) target = $region48
          $region47: #{tpu_custom_call.1} parent=43 // pred_region
            // Predicated region
            $region49: #{tpu_custom_call.1} parent=47 // pred_check
              _
            $region50: #{tpu_custom_call.1} parent=47 // pred_check_branch
              %244 = sbr.rel (0) target = $region52
            $region51: #{tpu_custom_call.1} parent=47 // pred_region
              loop: start=0, step=1, limit=1
              $region53: #{tpu_custom_call.1} parent=51 // loop_pre_header
                _
              $region54: #{tpu_custom_call.1} parent=51 // loop_header
                %s246 = sphi 0, %s250
                %p247 = scmp.ge.s32.totalorder %s246, 1
                %s251 = sphi %s240, %s240
                %s252 = sphi %s237, %s237
              $region55: #{tpu_custom_call.1} parent=51 // loop_header_branch
                %249 = sbr.rel (%p247) target = $region59
              $region56: #{tpu_custom_call.1} parent=51 // loop_body
                %v253 = vld [vmem:[%s251] sm:$0xff]
                %254 = vst [vmem:[%s252] sm:$0xff] %v253
                %v255 = vld [vmem:[%s251 + $0x8] sm:$0xff]
                %256 = vst [vmem:[%s252 + $0x8] sm:$0xff] %v255
                %v257 = vld [vmem:[%s251 + $0x40] sm:$0xff]
                %258 = vst [vmem:[%s252 + $0x10] sm:$0xff] %v257
                %v259 = vld [vmem:[%s251 + $0x48] sm:$0xff]
                %260 = vst [vmem:[%s252 + $0x18] sm:$0xff] %v259
                %v261 = vld [vmem:[%s251 + $0x80] sm:$0xff]
                %262 = vst [vmem:[%s252 + $0x20] sm:$0xff] %v261
                %v263 = vld [vmem:[%s251 + $0x88] sm:$0xff]
                %264 = vst [vmem:[%s252 + $0x28] sm:$0xff] %v263
              $region57: #{tpu_custom_call.1} parent=51 // loop_footer
                %s250 = sadd.s32 1, %s246
              $region58: #{tpu_custom_call.1} parent=51 // loop_footer_branch
                %245 = sbr.rel target = $region54
              $region59: #{tpu_custom_call.1} parent=51 // loop_exit
                _
            $region52: #{tpu_custom_call.1} parent=47 // pred_fallthru
              _
            // Predicated region
            $region60: #{tpu_custom_call.1} parent=47 // pred_check
              _
            $region61: #{tpu_custom_call.1} parent=47 // pred_check_branch
              %266 = sbr.rel target = $region63
            $region62: #{tpu_custom_call.1} parent=47 // pred_region
              _
            $region63: #{tpu_custom_call.1} parent=47 // pred_fallthru
              _
          $region48: #{tpu_custom_call.1} parent=43 // pred_fallthru
            _
          %267 = vnop
        $region44: #{tpu_custom_call.1} parent=39 // pred_fallthru
          _
      $region40: #{tpu_custom_call.1} parent=5 // pred_fallthru
        _
      %p268 = scmp.le.s32.totalorder 1, %s16
      %p269 = scmp.lt.s32.totalorder %s16, 5
      %p270 = pnand %p268, %p269
      %p271 = pneg %p270
      // Predicated region
      $region64: #{tpu_custom_call.1} parent=5 // pred_check
        _
      $region65: #{tpu_custom_call.1} parent=5 // pred_check_branch
        %273 = sbr.rel (%p270) target = $region67
      $region66: #{tpu_custom_call.1} parent=5 // pred_region
        %s274 = ssub.s32 %s16, 1
        %s275 = sand.u32 %s29, 1
        %s276 = sand.u32 %s29, 1
        %s277 = smul.addr %s276, 48
        %s278 = scalar_lea.vmem [#allocation3], %s277
        // Predicated region
        $region68: #{tpu_custom_call.1} parent=66 // pred_check
          %p279 = pneg %p42
        $region69: #{tpu_custom_call.1} parent=66 // pred_check_branch
          %281 = sbr.rel (%p279) target = $region71
        $region70: #{tpu_custom_call.1} parent=66 // pred_region
          _
        $region71: #{tpu_custom_call.1} parent=66 // pred_fallthru
          _
        %s282 = sand.u32 %s29, 1
        %s283 = sand.u32 %s29, 1
        %s284 = smul.addr %s283, 48
        %s285 = scalar_lea.vmem [#allocation3], %s284
        %p286 = pneg %p42
        %p287 = pneg %p39
        %p288 = pneg %p63
        %p289 = pneg %p60
        %p290 = pneg %p84
        %p291 = pneg %p81
        %p292 = pneg %p105
        %p293 = pneg %p102
        %p294 = pneg %p126
        %p295 = pneg %p123
        %p296 = pneg %p147
        %p297 = pneg %p144
        %p298 = pneg %p168
        %p299 = pneg %p165
        %p300 = pneg %p194
        %p301 = pneg %p191
        %s302 = sand.u32 %s181, 1
        %s303 = scalar_lea.sflag [#allocation5], %s302
        %s304 = sand.u32 %s181, 1
        %s305 = smul.addr %s304, 16
        %s306 = scalar_lea.vmem [#allocation4], %s305
        %s307 = smul.u32 2, %s21
        %s308 = smul.u32 2, %s21
        %v309 = vld [vmem:[%s278] sm:$0xff]
        %v310 = vld [vmem:[%s278 + $0x8] sm:$0xff]
        %v311 = vld [vmem:[%s278 + $0x10] sm:$0xff]
        %v312 = vld [vmem:[%s278 + $0x18] sm:$0xff]
        %v313 = vld [vmem:[%s278 + $0x20] sm:$0xff]
        %v314 = vld [vmem:[%s278 + $0x28] sm:$0xff]
        %v315 = vld [vmem:[%s1] sm:$0xff]
        %v316 = vld [vmem:[%s1 + $0x8] sm:$0xff]
        %v317 = vld [vmem:[%s1 + $0x10] sm:$0xff]
        %319 = vset.pattern.permute.xlu0 0
        %320 = vperm.xlu0 %319, %v315
        %v321 = vpop.permute.xlu0 %320
        %324 = vset.pattern.permute.xlu0 0
        %325 = vperm.xlu0 %324, %v316
        %v326 = vpop.permute.xlu0 %325
        %329 = vset.pattern.permute.xlu0 0
        %330 = vperm.xlu0 %329, %v317
        %v331 = vpop.permute.xlu0 %330
        %v333 = vmul.f32 %v309, %v321
        %v334 = vmul.f32 %v310, %v321
        %v335 = vmul.f32 %v311, %v326
        %v336 = vmul.f32 %v312, %v326
        %v337 = vmul.f32 %v313, %v331
        %v338 = vmul.f32 %v314, %v331
        %v339 = vld [vmem:[%s2] sm:$0xff]
        %v340 = vld [vmem:[%s2 + $0x8] sm:$0xff]
        %v341 = vld [vmem:[%s2 + $0x10] sm:$0xff]
        %343 = vset.pattern.permute.xlu0 0
        %344 = vperm.xlu0 %343, %v339
        %v345 = vpop.permute.xlu0 %344
        %348 = vset.pattern.permute.xlu0 0
        %349 = vperm.xlu0 %348, %v340
        %v350 = vpop.permute.xlu0 %349
        %353 = vset.pattern.permute.xlu0 0
        %354 = vperm.xlu0 %353, %v341
        %v355 = vpop.permute.xlu0 %354
        %v357 = vadd.f32 %v333, %v345
        %v358 = vadd.f32 %v334, %v345
        %v359 = vadd.f32 %v335, %v350
        %v360 = vadd.f32 %v336, %v350
        %v361 = vadd.f32 %v337, %v355
        %v362 = vadd.f32 %v338, %v355
        %v363 = vmax.f32 %v357, 0.0
        %v364 = vmax.f32 %v358, 0.0
        %v365 = vmax.f32 %v359, 0.0
        %v366 = vmax.f32 %v360, 0.0
        %v367 = vmax.f32 %v361, 0.0
        %v368 = vmax.f32 %v362, 0.0
        %v369 = vld [vmem:[%s3] sm:$0xff]
        %v370 = vld [vmem:[%s3 + $0x8] sm:$0xff]
        %v371 = vld [vmem:[%s3 + $0x10] sm:$0xff]
        %v372 = vld [vmem:[%s3 + $0x18] sm:$0xff]
        %v373 = vld [vmem:[%s4] sm:$0xff]
        %v374 = vld [vmem:[%s4 + $0x8] sm:$0xff]
        %v375 = vld [vmem:[%s4 + $0x10] sm:$0xff]
        %v376 = vld [vmem:[%s4 + $0x18] sm:$0xff]
        %378 = vset.pattern.permute.xlu0 0
        %379 = vperm.xlu0 %378, %v373
        %v380 = vpop.permute.xlu0 %379
        %383 = vset.pattern.permute.xlu0 0
        %384 = vperm.xlu0 %383, %v374
        %v385 = vpop.permute.xlu0 %384
        %388 = vset.pattern.permute.xlu0 0
        %389 = vperm.xlu0 %388, %v375
        %v390 = vpop.permute.xlu0 %389
        %393 = vset.pattern.permute.xlu0 0
        %394 = vperm.xlu0 %393, %v376
        %v395 = vpop.permute.xlu0 %394
        %vm397 = vcmask 195584
        %v399 = vsel %vm397, %v369, 0
        %v402 = vsel %vm397, %v370, 0
        %v405 = vsel %vm397, %v371, 0
        %v408 = vsel %vm397, %v372, 0
        %410 = vmatpush.msra.mxu0 0.0
        %411 = vmatpush.msra.mxu0 0.0
        %412 = vmatpush.msra.mxu0 0.0
        %413 = vmatpush.msra.mxu0 0.0
        %414 = vmatpush.msra.mxu0 0.0
        %415 = vmatpush.msra.mxu0 0.0
        %416 = vmatpush.msra.mxu0 0.0
        %417 = vmatpush.msra.mxu0 0.0
        %418 = vmatpush.msra.mxu0 0.0
        %419 = vmatpush.msra.mxu0 0.0
        %420 = vmatpush.msra.mxu0 0.0
        %421 = vmatpush.msra.mxu0 0.0
        %422 = vmatpush.msra.mxu0 0.0
        %423 = vmatpush.msra.mxu0 %v367
        %424 = vmatpush.msra.mxu0 %v365
        %425 = vmatpush.msra.mxu0 %v363
        %426 = vmatmul.f32.gmra.mxu0 %v399
        %v427 = vpop.f32.mrf.mxu0
        %v428 = vadd.f32 %v380, %v427
        %429 = vmatmul.f32.gmra.mxu0 %v402
        %v430 = vpop.f32.mrf.mxu0
        %v431 = vadd.f32 %v385, %v430
        %432 = vmatmul.f32.gmra.mxu0 %v405
        %v433 = vpop.f32.mrf.mxu0
        %v434 = vadd.f32 %v390, %v433
        %435 = vmatmul.f32.gmra.mxu0 %v408
        %v436 = vpop.f32.mrf.mxu0
        %v437 = vadd.f32 %v395, %v436
        %438 = vdwg.mxu0
        %439 = vmatpush.msra.mxu0 0.0
        %440 = vmatpush.msra.mxu0 0.0
        %441 = vmatpush.msra.mxu0 0.0
        %442 = vmatpush.msra.mxu0 0.0
        %443 = vmatpush.msra.mxu0 0.0
        %444 = vmatpush.msra.mxu0 0.0
        %445 = vmatpush.msra.mxu0 0.0
        %446 = vmatpush.msra.mxu0 0.0
        %447 = vmatpush.msra.mxu0 0.0
        %448 = vmatpush.msra.mxu0 0.0
        %449 = vmatpush.msra.mxu0 0.0
        %450 = vmatpush.msra.mxu0 0.0
        %451 = vmatpush.msra.mxu0 0.0
        %452 = vmatpush.msra.mxu0 %v368
        %453 = vmatpush.msra.mxu0 %v366
        %454 = vmatpush.msra.mxu0 %v364
        %455 = vmatmul.f32.gmra.mxu0 %v399
        %v456 = vpop.f32.mrf.mxu0
        %v457 = vadd.f32 %v380, %v456
        %458 = vmatmul.f32.gmra.mxu0 %v402
        %v459 = vpop.f32.mrf.mxu0
        %v460 = vadd.f32 %v385, %v459
        %461 = vmatmul.f32.gmra.mxu0 %v405
        %v462 = vpop.f32.mrf.mxu0
        %v463 = vadd.f32 %v390, %v462
        %464 = vmatmul.f32.gmra.mxu0 %v408
        %v465 = vpop.f32.mrf.mxu0
        %v466 = vadd.f32 %v395, %v465
        %467 = vdwg.mxu0
        %v468 = vmax.f32 %v428, 0.0
        %v469 = vmax.f32 %v457, 0.0
        %v470 = vmax.f32 %v431, 0.0
        %v471 = vmax.f32 %v460, 0.0
        %v472 = vmax.f32 %v434, 0.0
        %v473 = vmax.f32 %v463, 0.0
        %v474 = vmax.f32 %v437, 0.0
        %v475 = vmax.f32 %v466, 0.0
        %v476 = vld [vmem:[%s5] sm:$0xff]
        %v477 = vld [vmem:[%s5 + $0x8] sm:$0xff]
        %v478 = vld [vmem:[%s5 + $0x10] sm:$0xff]
        %v479 = vld [vmem:[%s5 + $0x18] sm:$0xff]
        %v480 = vld [vmem:[%s5 + $0x20] sm:$0xff]
        %v481 = vld [vmem:[%s5 + $0x28] sm:$0xff]
        %v482 = vld [vmem:[%s5 + $0x30] sm:$0xff]
        %v483 = vld [vmem:[%s5 + $0x38] sm:$0xff]
        %v484 = vld [vmem:[%s5 + $0x40] sm:$0xff]
        %vm485 = vcmask 261120
        %v487 = vsel %vm485, %v476, 0
        %v490 = vsel %vm485, %v477, 0
        %v493 = vsel %vm485, %v478, 0
        %v496 = vsel %vm485, %v479, 0
        %v499 = vsel %vm485, %v480, 0
        %v502 = vsel %vm485, %v481, 0
        %v505 = vsel %vm485, %v482, 0
        %v508 = vsel %vm485, %v483, 0
        %v511 = vsel %vm485, %v484, 0
        %513 = vmatpush.msra.mxu0 0.0
        %514 = vmatpush.msra.mxu0 0.0
        %515 = vmatpush.msra.mxu0 0.0
        %516 = vmatpush.msra.mxu0 0.0
        %517 = vmatpush.msra.mxu0 0.0
        %518 = vmatpush.msra.mxu0 0.0
        %519 = vmatpush.msra.mxu0 0.0
        %520 = vmatpush.msra.mxu0 0.0
        %521 = vmatpush.msra.mxu0 0.0
        %522 = vmatpush.msra.mxu0 0.0
        %523 = vmatpush.msra.mxu0 0.0
        %524 = vmatpush.msra.mxu0 0.0
        %525 = vmatpush.msra.mxu0 %v474
        %526 = vmatpush.msra.mxu0 %v472
        %527 = vmatpush.msra.mxu0 %v470
        %528 = vmatpush.msra.mxu0 %v468
        %529 = vmatmul.f32.gmra.mxu0 %v487
        %v530 = vpop.f32.mrf.mxu0
        %v531 = vadd.f32 0.0, %v530
        %532 = vmatmul.f32.gmra.mxu0 %v490
        %v533 = vpop.f32.mrf.mxu0
        %v534 = vadd.f32 0.0, %v533
        %535 = vmatmul.f32.gmra.mxu0 %v493
        %v536 = vpop.f32.mrf.mxu0
        %v537 = vadd.f32 0.0, %v536
        %538 = vmatmul.f32.gmra.mxu0 %v496
        %v539 = vpop.f32.mrf.mxu0
        %v540 = vadd.f32 0.0, %v539
        %541 = vmatmul.f32.gmra.mxu0 %v499
        %v542 = vpop.f32.mrf.mxu0
        %v543 = vadd.f32 0.0, %v542
        %544 = vmatmul.f32.gmra.mxu0 %v502
        %v545 = vpop.f32.mrf.mxu0
        %v546 = vadd.f32 0.0, %v545
        %547 = vmatmul.f32.gmra.mxu0 %v505
        %v548 = vpop.f32.mrf.mxu0
        %v549 = vadd.f32 0.0, %v548
        %550 = vmatmul.f32.gmra.mxu0 %v508
        %v551 = vpop.f32.mrf.mxu0
        %v552 = vadd.f32 0.0, %v551
        %553 = vmatmul.f32.gmra.mxu0 %v511
        %v554 = vpop.f32.mrf.mxu0
        %v555 = vadd.f32 0.0, %v554
        %556 = vdwg.mxu0
        %557 = vmatpush.msra.mxu0 0.0
        %558 = vmatpush.msra.mxu0 0.0
        %559 = vmatpush.msra.mxu0 0.0
        %560 = vmatpush.msra.mxu0 0.0
        %561 = vmatpush.msra.mxu0 0.0
        %562 = vmatpush.msra.mxu0 0.0
        %563 = vmatpush.msra.mxu0 0.0
        %564 = vmatpush.msra.mxu0 0.0
        %565 = vmatpush.msra.mxu0 0.0
        %566 = vmatpush.msra.mxu0 0.0
        %567 = vmatpush.msra.mxu0 0.0
        %568 = vmatpush.msra.mxu0 0.0
        %569 = vmatpush.msra.mxu0 %v475
        %570 = vmatpush.msra.mxu0 %v473
        %571 = vmatpush.msra.mxu0 %v471
        %572 = vmatpush.msra.mxu0 %v469
        %573 = vmatmul.f32.gmra.mxu0 %v487
        %v574 = vpop.f32.mrf.mxu0
        %v575 = vadd.f32 0.0, %v574
        %576 = vmatmul.f32.gmra.mxu0 %v490
        %v577 = vpop.f32.mrf.mxu0
        %v578 = vadd.f32 0.0, %v577
        %579 = vmatmul.f32.gmra.mxu0 %v493
        %v580 = vpop.f32.mrf.mxu0
        %v581 = vadd.f32 0.0, %v580
        %582 = vmatmul.f32.gmra.mxu0 %v496
        %v583 = vpop.f32.mrf.mxu0
        %v584 = vadd.f32 0.0, %v583
        %585 = vmatmul.f32.gmra.mxu0 %v499
        %v586 = vpop.f32.mrf.mxu0
        %v587 = vadd.f32 0.0, %v586
        %588 = vmatmul.f32.gmra.mxu0 %v502
        %v589 = vpop.f32.mrf.mxu0
        %v590 = vadd.f32 0.0, %v589
        %591 = vmatmul.f32.gmra.mxu0 %v505
        %v592 = vpop.f32.mrf.mxu0
        %v593 = vadd.f32 0.0, %v592
        %594 = vmatmul.f32.gmra.mxu0 %v508
        %v595 = vpop.f32.mrf.mxu0
        %v596 = vadd.f32 0.0, %v595
        %597 = vmatmul.f32.gmra.mxu0 %v511
        %v598 = vpop.f32.mrf.mxu0
        %v599 = vadd.f32 0.0, %v598
        %600 = vdwg.mxu0
        %601 = vst [vmem:[#allocation2] sm:$0xff] 0.0
        %602 = vst [vmem:[#allocation2 + $0x20] sm:$0xff] 0.0
        %603 = vst [vmem:[#allocation2 + $0x40] sm:$0xff] 0.0
        %604 = vst [vmem:[#allocation2 + $0x60] sm:$0xff] 0.0
        %605 = vst [vmem:[#allocation2 + $0x80] sm:$0xff] 0.0
        %606 = vst [vmem:[#allocation2 + $0xa0] sm:$0xff] 0.0
        %607 = vst [vmem:[#allocation2 + $0xc0] sm:$0xff] 0.0
        %608 = vst [vmem:[#allocation2 + $0xe0] sm:$0xff] 0.0
        %609 = vst [vmem:[#allocation2 + $0x100] sm:$0xff] 0.0
        %610 = vst [vmem:[#allocation2 + $0x18] sm:$0xff] 0.0
        %611 = vst [vmem:[#allocation2 + $0x38] sm:$0xff] 0.0
        %612 = vst [vmem:[#allocation2 + $0x58] sm:$0xff] 0.0
        %613 = vst [vmem:[#allocation2 + $0x78] sm:$0xff] 0.0
        %614 = vst [vmem:[#allocation2 + $0x98] sm:$0xff] 0.0
        %615 = vst [vmem:[#allocation2 + $0xb8] sm:$0xff] 0.0
        %616 = vst [vmem:[#allocation2 + $0xd8] sm:$0xff] 0.0
        %617 = vst [vmem:[#allocation2 + $0xf8] sm:$0xff] 0.0
        %618 = vst [vmem:[#allocation2 + $0x118] sm:$0xff] 0.0
        %619 = vst [vmem:[#allocation2 + $0x8] sm:$0xff] %v531
        %620 = vst [vmem:[#allocation2 + $0x10] sm:$0xff] %v575
        %621 = vst [vmem:[#allocation2 + $0x28] sm:$0xff] %v534
        %622 = vst [vmem:[#allocation2 + $0x30] sm:$0xff] %v578
        %623 = vst [vmem:[#allocation2 + $0x48] sm:$0xff] %v537
        %624 = vst [vmem:[#allocation2 + $0x50] sm:$0xff] %v581
        %625 = vst [vmem:[#allocation2 + $0x68] sm:$0xff] %v540
        %626 = vst [vmem:[#allocation2 + $0x70] sm:$0xff] %v584
        %627 = vst [vmem:[#allocation2 + $0x88] sm:$0xff] %v543
        %628 = vst [vmem:[#allocation2 + $0x90] sm:$0xff] %v587
        %629 = vst [vmem:[#allocation2 + $0xa8] sm:$0xff] %v546
        %630 = vst [vmem:[#allocation2 + $0xb0] sm:$0xff] %v590
        %631 = vst [vmem:[#allocation2 + $0xc8] sm:$0xff] %v549
        %632 = vst [vmem:[#allocation2 + $0xd0] sm:$0xff] %v593
        %633 = vst [vmem:[#allocation2 + $0xe8] sm:$0xff] %v552
        %634 = vst [vmem:[#allocation2 + $0xf0] sm:$0xff] %v596
        %635 = vst [vmem:[#allocation2 + $0x108] sm:$0xff] %v555
        %636 = vst [vmem:[#allocation2 + $0x110] sm:$0xff] %v599
        %v637 = vld [vmem:[#allocation2] sm:$0xff]
        %v638 = vld [vmem:[#allocation2 + $0x8] sm:$0xff]
        %v639 = vld [vmem:[#allocation2 + $0x10] sm:$0xff]
        %v640 = vld [vmem:[%s6] ss:$8 sm:$0x3]
        %v642 = vperm.slane %v640, 0
        %v643 = vperm.slane %v640, 1
        %649 = vrot.lane.b32.xlu0 %v637, 17
        %v650 = vpop.permute.xlu0 %649
        %651 = vrot.lane.b32.xlu0 %v638, 17
        %v652 = vpop.permute.xlu0 %651
        %653 = vrot.lane.b32.xlu0 %v639, 17
        %v654 = vpop.permute.xlu0 %653
        %vm655 = vcmask 138240
        %v656 = vsel %vm655, %v650, %v652
        %v657 = vsel %vm655, %v652, %v654
        %v660 = vmul.f32 %v642, %v656
        %v661 = vmul.f32 %v643, %v657
        %v662 = vadd.f32 %v660, 0.0
        %v663 = vadd.f32 %v661, 0.0
        %v664 = vld [vmem:[#allocation2 + $0x20] sm:$0xff]
        %v665 = vld [vmem:[#allocation2 + $0x28] sm:$0xff]
        %v666 = vld [vmem:[#allocation2 + $0x30] sm:$0xff]
        %s667 = scalar_lea.vmem %s6, 1
        %v668 = vld [vmem:[%s667] ss:$8 sm:$0x3]
        %v670 = vperm.slane %v668, 0
        %v671 = vperm.slane %v668, 1
        %677 = vrot.lane.b32.xlu0 %v664, 16
        %v678 = vpop.permute.xlu0 %677
        %679 = vrot.lane.b32.xlu0 %v665, 16
        %v680 = vpop.permute.xlu0 %679
        %681 = vrot.lane.b32.xlu0 %v666, 16
        %v682 = vpop.permute.xlu0 %681
        %vm683 = vcmask 130048
        %v684 = vsel %vm683, %v678, %v680
        %v685 = vsel %vm683, %v680, %v682
        %v688 = vmul.f32 %v670, %v684
        %v689 = vmul.f32 %v671, %v685
        %v690 = vadd.f32 %v662, %v688
        %v691 = vadd.f32 %v663, %v689
        %v692 = vld [vmem:[#allocation2 + $0x40] sm:$0xff]
        %v693 = vld [vmem:[#allocation2 + $0x48] sm:$0xff]
        %v694 = vld [vmem:[#allocation2 + $0x50] sm:$0xff]
        %s695 = scalar_lea.vmem %s6, 2
        %v696 = vld [vmem:[%s695] ss:$8 sm:$0x3]
        %v698 = vperm.slane %v696, 0
        %v699 = vperm.slane %v696, 1
        %705 = vrot.lane.b32.xlu0 %v692, 15
        %v706 = vpop.permute.xlu0 %705
        %707 = vrot.lane.b32.xlu0 %v693, 15
        %v708 = vpop.permute.xlu0 %707
        %709 = vrot.lane.b32.xlu0 %v694, 15
        %v710 = vpop.permute.xlu0 %709
        %vm711 = vcmask 121856
        %v712 = vsel %vm711, %v706, %v708
        %v713 = vsel %vm711, %v708, %v710
        %v716 = vmul.f32 %v698, %v712
        %v717 = vmul.f32 %v699, %v713
        %v718 = vadd.f32 %v690, %v716
        %v719 = vadd.f32 %v691, %v717
        %v720 = vld [vmem:[#allocation2 + $0x60] sm:$0xff]
        %v721 = vld [vmem:[#allocation2 + $0x68] sm:$0xff]
        %v722 = vld [vmem:[#allocation2 + $0x70] sm:$0xff]
        %s723 = scalar_lea.vmem %s6, 3
        %v724 = vld [vmem:[%s723] ss:$8 sm:$0x3]
        %v726 = vperm.slane %v724, 0
        %v727 = vperm.slane %v724, 1
        %733 = vrot.lane.b32.xlu0 %v720, 1
        %v734 = vpop.permute.xlu0 %733
        %735 = vrot.lane.b32.xlu0 %v721, 1
        %v736 = vpop.permute.xlu0 %735
        %737 = vrot.lane.b32.xlu0 %v722, 1
        %v738 = vpop.permute.xlu0 %737
        %vm739 = vcmask 7168
        %v740 = vsel %vm739, %v734, %v736
        %v741 = vsel %vm739, %v736, %v738
        %v744 = vmul.f32 %v726, %v740
        %v745 = vmul.f32 %v727, %v741
        %v746 = vadd.f32 %v718, %v744
        %v747 = vadd.f32 %v719, %v745
        %v748 = vld [vmem:[#allocation2 + $0x88] sm:$0xff]
        %v749 = vld [vmem:[#allocation2 + $0x90] sm:$0xff]
        %s750 = scalar_lea.vmem %s6, 4
        %v751 = vld [vmem:[%s750] ss:$8 sm:$0x3]
        %v753 = vperm.slane %v751, 0
        %v754 = vperm.slane %v751, 1
        %v757 = vmul.f32 %v753, %v748
        %v758 = vmul.f32 %v754, %v749
        %v759 = vadd.f32 %v746, %v757
        %v760 = vadd.f32 %v747, %v758
        %v761 = vld [vmem:[#allocation2 + $0xa8] sm:$0xff]
        %v762 = vld [vmem:[#allocation2 + $0xb0] sm:$0xff]
        %v763 = vld [vmem:[#allocation2 + $0xb8] sm:$0xff]
        %s764 = scalar_lea.vmem %s6, 5
        %v765 = vld [vmem:[%s764] ss:$8 sm:$0x3]
        %v767 = vperm.slane %v765, 0
        %v768 = vperm.slane %v765, 1
        %774 = vrot.lane.b32.xlu0 %v761, 127
        %v775 = vpop.permute.xlu0 %774
        %776 = vrot.lane.b32.xlu0 %v762, 127
        %v777 = vpop.permute.xlu0 %776
        %778 = vrot.lane.b32.xlu0 %v763, 127
        %v779 = vpop.permute.xlu0 %778
        %vm780 = vcmask 1039360
        %v781 = vsel %vm780, %v775, %v777
        %v782 = vsel %vm780, %v777, %v779
        %v785 = vmul.f32 %v767, %v781
        %v786 = vmul.f32 %v768, %v782
        %v787 = vadd.f32 %v759, %v785
        %v788 = vadd.f32 %v760, %v786
        %v789 = vld [vmem:[#allocation2 + $0xc8] sm:$0xff]
        %v790 = vld [vmem:[#allocation2 + $0xd0] sm:$0xff]
        %v791 = vld [vmem:[#allocation2 + $0xd8] sm:$0xff]
        %s792 = scalar_lea.vmem %s6, 6
        %v793 = vld [vmem:[%s792] ss:$8 sm:$0x3]
        %v795 = vperm.slane %v793, 0
        %v796 = vperm.slane %v793, 1
        %802 = vrot.lane.b32.xlu0 %v789, 113
        %v803 = vpop.permute.xlu0 %802
        %804 = vrot.lane.b32.xlu0 %v790, 113
        %v805 = vpop.permute.xlu0 %804
        %806 = vrot.lane.b32.xlu0 %v791, 113
        %v807 = vpop.permute.xlu0 %806
        %vm808 = vcmask 924672
        %v809 = vsel %vm808, %v803, %v805
        %v810 = vsel %vm808, %v805, %v807
        %v813 = vmul.f32 %v795, %v809
        %v814 = vmul.f32 %v796, %v810
        %v815 = vadd.f32 %v787, %v813
        %v816 = vadd.f32 %v788, %v814
        %v817 = vld [vmem:[#allocation2 + $0xe8] sm:$0xff]
        %v818 = vld [vmem:[#allocation2 + $0xf0] sm:$0xff]
        %v819 = vld [vmem:[#allocation2 + $0xf8] sm:$0xff]
        %s820 = scalar_lea.vmem %s6, 7
        %v821 = vld [vmem:[%s820] ss:$8 sm:$0x3]
        %v823 = vperm.slane %v821, 0
        %v824 = vperm.slane %v821, 1
        %830 = vrot.lane.b32.xlu0 %v817, 112
        %v831 = vpop.permute.xlu0 %830
        %832 = vrot.lane.b32.xlu0 %v818, 112
        %v833 = vpop.permute.xlu0 %832
        %834 = vrot.lane.b32.xlu0 %v819, 112
        %v835 = vpop.permute.xlu0 %834
        %vm836 = vcmask 916480
        %v837 = vsel %vm836, %v831, %v833
        %v838 = vsel %vm836, %v833, %v835
        %v841 = vmul.f32 %v823, %v837
        %v842 = vmul.f32 %v824, %v838
        %v843 = vadd.f32 %v815, %v841
        %v844 = vadd.f32 %v816, %v842
        %v845 = vld [vmem:[#allocation2 + $0x108] sm:$0xff]
        %v846 = vld [vmem:[#allocation2 + $0x110] sm:$0xff]
        %v847 = vld [vmem:[#allocation2 + $0x118] sm:$0xff]
        %s848 = scalar_lea.vmem %s6, 16
        %v849 = vld [vmem:[%s848] ss:$8 sm:$0x3]
        %v851 = vperm.slane %v849, 0
        %v852 = vperm.slane %v849, 1
        %858 = vrot.lane.b32.xlu0 %v845, 111
        %v859 = vpop.permute.xlu0 %858
        %860 = vrot.lane.b32.xlu0 %v846, 111
        %v861 = vpop.permute.xlu0 %860
        %862 = vrot.lane.b32.xlu0 %v847, 111
        %v863 = vpop.permute.xlu0 %862
        %vm864 = vcmask 908288
        %v865 = vsel %vm864, %v859, %v861
        %v866 = vsel %vm864, %v861, %v863
        %v869 = vmul.f32 %v851, %v865
        %v870 = vmul.f32 %v852, %v866
        %v871 = vadd.f32 %v843, %v869
        %v872 = vadd.f32 %v844, %v870
        %873 = vst [vmem:[%s306] sm:$0xff] %v871
        %874 = vst [vmem:[%s306 + $0x8] sm:$0xff] %v872
        %s875 = sand.u32 %s181, 1
        %s876 = scalar_lea.sflag [#allocation5], %s875
        %s877 = sand.u32 %s181, 1
        %s878 = smul.addr %s877, 16
        %s879 = scalar_lea.vmem [#allocation4], %s878
        // Predicated region
        $region72: #{tpu_custom_call.1} parent=66 // pred_check
          %p880 = pneg %p191
        $region73: #{tpu_custom_call.1} parent=66 // pred_check_branch
          %882 = sbr.rel (%p880) target = $region75
        $region74: #{tpu_custom_call.1} parent=66 // pred_region
          %s883 = smul.u32 2, %s21
          %885 = vsyncadd %s876, 0
          %s886 = smul.addr %s883, 8
          %s887 = scalar_lea.hbm %s7, %s886
          %s889 = sshll.u32 %s879, 4
          %s890 = int_to_ptr.vmem [resolvable:$true] %s889
          %s891 = sshll.u32 %s887, 4
          %s892 = int_to_ptr.hbm [resolvable:$true] %s891
          %894 = dma.vmem_to_hbm [thread:$0]  %s890, 256, %s892, %s876
        $region75: #{tpu_custom_call.1} parent=66 // pred_fallthru
          _
      $region67: #{tpu_custom_call.1} parent=5 // pred_fallthru
        _
      %p895 = scmp.le.s32.totalorder 2, %s16
      // Predicated region
      $region76: #{tpu_custom_call.1} parent=5 // pred_check
        %p896 = pneg %p895
      $region77: #{tpu_custom_call.1} parent=5 // pred_check_branch
        %898 = sbr.rel (%p896) target = $region79
      $region78: #{tpu_custom_call.1} parent=5 // pred_region
        %s899 = ssub.s32 %s16, 2
        // Predicated region
        $region80: #{tpu_custom_call.1} parent=78 // pred_check
          %p900 = pneg %p197
        $region81: #{tpu_custom_call.1} parent=78 // pred_check_branch
          %902 = sbr.rel (%p900) target = $region83
        $region82: #{tpu_custom_call.1} parent=78 // pred_region
          %s903 = sand.u32 %s182, 1
          %s904 = scalar_lea.sflag [#allocation5], %s903
          %s905 = sand.u32 %s182, 1
          %s906 = smul.addr %s905, 16
          %s907 = scalar_lea.vmem [#allocation4], %s906
          %909 = dma.done %s904, 256
        $region83: #{tpu_custom_call.1} parent=78 // pred_fallthru
          _
      $region79: #{tpu_custom_call.1} parent=5 // pred_fallthru
        _
    $region6: #{tpu_custom_call.1} parent=1 // loop_footer
      %s20 = sadd.s32 1, %s16
    $region7: #{tpu_custom_call.1} parent=1 // loop_footer_branch
      %15 = sbr.rel target = $region3
    $region8: #{tpu_custom_call.1} parent=1 // loop_exit
      _
    %910 = vsyncpa [#allocation5], 1
    %s911 = scalar_lea.sflag [#allocation5], 1
    %912 = vsyncpa %s911, 1

</llo_original>
